<compile_context>
chip_gen: v5e
topology: v5e:2x2
jax: 0.10.0
libtpu: 0.0.40
codegen_flags: <defaults>
</compile_context>

<pallas_src>
import functools

import jax
import jax.numpy as jnp
from jax.experimental import pallas as pl
from jax.experimental.pallas import tpu as pltpu


# ----------------------------------------------------------------------------
# Fused kernel: grid axis = block index.  Per grid step:
#   GINConv:  h = MLP((1 + eps) * x + A @ x)
#             MLP = Linear(Din,H) -> BatchNorm(H) -> ReLU -> Linear(H,H)
#   pooling:  global_add_pool  ==  P @ h
#   fc:       Linear(H, C) -> BatchNorm1d(C)
#   score accumulated into the (resident) output block; hidden rep carried in
#   VMEM scratch to the next block.
# ----------------------------------------------------------------------------
def _gnn_kernel(eps_ref, x_ref, a_ref, p_ref,
                w1_ref, b1_ref, g1_ref, be1_ref,
                w2_ref, b2_ref,
                wf_ref, bf_ref, gf_ref, bef_ref,
                score_ref, hid_ref):
    bn_eps = 1e-5
    blk = pl.program_id(0)

    @pl.when(blk == 0)
    def _init():
        hid_ref[...] = x_ref[...]                 # padded node features
        score_ref[...] = jnp.zeros_like(score_ref)

    x = hid_ref[...]                                                     # (N, H)

    # --- GIN neighbor aggregation: sum_{j -> i} x_j  ==  A @ x (MXU) ---------
    agg = jnp.dot(a_ref[...], x, preferred_element_type=jnp.float32)     # (N, H)
    h = (1.0 + eps_ref[blk]) * x + agg                                   # (N, H)

    # --- MLP layer 1: Linear(Din->H) (Din zero-padded into the H rows) -------
    h = jnp.dot(h, w1_ref[0], preferred_element_type=jnp.float32) + b1_ref[0]

    # --- BatchNorm over nodes (training-mode batch stats, biased variance) ---
    mu = jnp.mean(h, axis=0, keepdims=True)
    var = jnp.mean((h - mu) * (h - mu), axis=0, keepdims=True)
    h = (h - mu) * jax.lax.rsqrt(var + bn_eps) * g1_ref[0] + be1_ref[0]

    # --- ReLU -----------------------------------------------------------------
    h = jnp.maximum(h, 0.0)

    # --- MLP layer 2: Linear(H, H) -> hidden rep for the next block -----------
    hid = jnp.dot(h, w2_ref[0], preferred_element_type=jnp.float32) + b2_ref[0]
    hid_ref[...] = hid                                                   # (N, H)

    # --- global_add_pool: per-graph sum  ==  P @ hid ---------------------------
    pooled = jnp.dot(p_ref[...], hid, preferred_element_type=jnp.float32)  # (G, H)

    # --- fc: Linear(H, C) + BatchNorm1d(C) over graphs -------------------------
    s = jnp.dot(pooled, wf_ref[0], preferred_element_type=jnp.float32) + bf_ref[0]
    mu2 = jnp.mean(s, axis=0, keepdims=True)
    var2 = jnp.mean((s - mu2) * (s - mu2), axis=0, keepdims=True)
    s = (s - mu2) * jax.lax.rsqrt(var2 + bn_eps) * gf_ref[0] + bef_ref[0]

    # --- accumulate final_score (output block resident across the grid axis) --
    score_ref[...] = score_ref[...] + s


def gnn_forward(x, edge_index, batch_idx, params, num_graphs, num_classes):
    """Full GNN forward (all Blocks) in a single Pallas kernel."""
    n_nodes = x.shape[0]
    num_blocks = params["W1"].shape[0]
    hid_dim = params["W1"].shape[-1]

    # Zero-pad node features along the feature axis to hid_dim; W1 of block 0
    # is zero-padded on the matching rows, so the math is unchanged.
    x_pad = jnp.zeros((n_nodes, hid_dim), jnp.float32).at[:, : x.shape[1]].set(x)

    # Dense adjacency A[i, j] = #edges (j -> i)  (MessagePassing 'add' aggr,
    # source_to_target flow: message x_j aggregated at target i).
    adj = jnp.zeros((n_nodes, n_nodes), jnp.float32)
    adj = adj.at[edge_index[1], edge_index[0]].add(1.0)

    # Pooling matrix P[g, n] = 1 if node n belongs to graph g (global_add_pool).
    pool_mat = (batch_idx[None, :] == jnp.arange(num_graphs)[:, None]).astype(jnp.float32)

    grid_spec = pltpu.PrefetchScalarGridSpec(
        num_scalar_prefetch=0,
        grid=(num_blocks,),
        in_specs=[
            # eps: tiny per-block scalars -> SMEM (scalar path, no VMEM DMA).
            pl.BlockSpec(memory_space=pltpu.MemorySpace.SMEM),
            # Graph-level operands: resident full-array VMEM blocks (same block
            # index every step -> fetched once).
            pl.BlockSpec((n_nodes, hid_dim), lambda b: (0, 0)),          # x_pad
            pl.BlockSpec((n_nodes, n_nodes), lambda b: (0, 0)),          # adj
            pl.BlockSpec((num_graphs, n_nodes), lambda b: (0, 0)),       # pool_mat
            # Per-block stacked weights, selected by the grid index.
            pl.BlockSpec((1, hid_dim, hid_dim), lambda b: (b, 0, 0)),    # W1
            pl.BlockSpec((1, 1, hid_dim), lambda b: (b, 0, 0)),          # b1
            pl.BlockSpec((1, 1, hid_dim), lambda b: (b, 0, 0)),          # gamma1
            pl.BlockSpec((1, 1, hid_dim), lambda b: (b, 0, 0)),          # beta1
            pl.BlockSpec((1, hid_dim, hid_dim), lambda b: (b, 0, 0)),    # W2
            pl.BlockSpec((1, 1, hid_dim), lambda b: (b, 0, 0)),          # b2
            pl.BlockSpec((1, hid_dim, num_classes), lambda b: (b, 0, 0)),  # Wfc
            pl.BlockSpec((1, 1, num_classes), lambda b: (b, 0, 0)),      # bfc
            pl.BlockSpec((1, 1, num_classes), lambda b: (b, 0, 0)),      # gammaf
            pl.BlockSpec((1, 1, num_classes), lambda b: (b, 0, 0)),      # betaf
        ],
        out_specs=pl.BlockSpec((num_graphs, num_classes), lambda b: (0, 0)),
        scratch_shapes=[pltpu.VMEM((n_nodes, hid_dim), jnp.float32)],   # hidden rep
    )

    final_score = pl.pallas_call(
        _gnn_kernel,
        out_shape=jax.ShapeDtypeStruct((num_graphs, num_classes), jnp.float32),
        grid_spec=grid_spec,
        compiler_params=pltpu.CompilerParams(dimension_semantics=("arbitrary",)),
    )(
        params["eps"], x_pad, adj, pool_mat,
        params["W1"], params["b1"], params["gamma1"], params["beta1"],
        params["W2"], params["b2"],
        params["Wfc"], params["bfc"], params["gammaf"], params["betaf"],
    )

    if num_classes == 1:
        return final_score.reshape(-1)
    return final_score


# ----------------------------------------------------------------------------
# Parameter initialization (deterministic, mimicking nn.Linear default init),
# stacked across blocks so the kernel can index them with the grid axis.
# ----------------------------------------------------------------------------
def _linear_init(key, fan_in, fan_out):
    kw, kb = jax.random.split(key)
    bound = 1.0 / jnp.sqrt(jnp.float32(fan_in))
    w = jax.random.uniform(kw, (fan_in, fan_out), jnp.float32, -bound, bound)
    b = jax.random.uniform(kb, (1, fan_out), jnp.float32, -bound, bound)
    return w, b


def init_stacked_params(key, num_node_features, hid_dim, num_classes, num_blocks):
    assert num_node_features <= hid_dim, "W1 padding assumes in_dim <= hid_dim"
    block_input_dim = [num_node_features] + [hid_dim] * (num_blocks - 1)
    keys = jax.random.split(key, num_blocks)

    W1, B1, G1, Be1, W2, B2, Wf, Bf, Gf, Bef = ([] for _ in range(10))
    for i in range(num_blocks):
        k1, k2, k3 = jax.random.split(keys[i], 3)
        din = block_input_dim[i]
        w1, b1 = _linear_init(k1, din, hid_dim)
        # Zero-pad the input-dim rows up to hid_dim (matches the x padding).
        w1 = jnp.zeros((hid_dim, hid_dim), jnp.float32).at[:din, :].set(w1)
        w2, b2 = _linear_init(k2, hid_dim, hid_dim)
        wf, bf = _linear_init(k3, hid_dim, num_classes)
        W1.append(w1); B1.append(b1)
        G1.append(jnp.ones((1, hid_dim), jnp.float32))
        Be1.append(jnp.zeros((1, hid_dim), jnp.float32))
        W2.append(w2); B2.append(b2)
        Wf.append(wf); Bf.append(bf)
        Gf.append(jnp.ones((1, num_classes), jnp.float32))
        Bef.append(jnp.zeros((1, num_classes), jnp.float32))

    return {
        "eps": jnp.zeros((num_blocks,), jnp.float32),     # GIN eps init = 0
        "W1": jnp.stack(W1), "b1": jnp.stack(B1),
        "gamma1": jnp.stack(G1), "beta1": jnp.stack(Be1),
        "W2": jnp.stack(W2), "b2": jnp.stack(B2),
        "Wfc": jnp.stack(Wf), "bfc": jnp.stack(Bf),
        "gammaf": jnp.stack(Gf), "betaf": jnp.stack(Bef),
    }


# ----------------------------------------------------------------------------
if __name__ == "__main__":
    # Hyperparameters (small, consistent with the module).
    num_block = 3            # => num_block - 1 = 2 Blocks
    num_node_features = 4
    conv_hid = 32
    num_classes = 3
    num_graphs = 2
    nodes_per_graph = 8
    n_nodes = num_graphs * nodes_per_graph     # 16

    key = jax.random.PRNGKey(0)
    k_x, k_p = jax.random.split(key)

    # Node features.
    x = jax.random.normal(k_x, (n_nodes, num_node_features), jnp.float32)

    # Batch assignment: first 8 nodes -> graph 0, next 8 -> graph 1.
    batch_idx = jnp.repeat(jnp.arange(num_graphs), nodes_per_graph)

    # Edges: a bidirectional ring within each graph.
    srcs, dsts = [], []
    for g in range(num_graphs):
        base = g * nodes_per_graph
        for i in range(nodes_per_graph):
            a = base + i
            b = base + (i + 1) % nodes_per_graph
            srcs += [a, b]
            dsts += [b, a]
    edge_index = jnp.array([srcs, dsts], dtype=jnp.int32)     # (2, E)

    params = init_stacked_params(
        k_p, num_node_features, conv_hid, num_classes, num_block - 1)

    fwd = jax.jit(functools.partial(
        gnn_forward, num_graphs=num_graphs, num_classes=num_classes))
    out = fwd(x, edge_index, batch_idx, params)
    out = jax.block_until_ready(out)

    assert out.shape == (num_graphs, num_classes), out.shape
    assert jnp.all(jnp.isfinite(out))
    print("KERNEL_OK")
</pallas_src>

<mosaic_0001>
module attributes {stable_mosaic.version = 11 : i64} {
  func.func @_gnn_kernel(%arg0: i32, %arg1: memref<2xf32, #tpu.memory_space<smem>>, %arg2: memref<16x32xf32, #tpu.memory_space<vmem>>, %arg3: memref<16x16xf32, #tpu.memory_space<vmem>>, %arg4: memref<2x16xf32, #tpu.memory_space<vmem>>, %arg5: memref<1x32x32xf32, #tpu.memory_space<vmem>>, %arg6: memref<1x1x32xf32, #tpu.memory_space<vmem>>, %arg7: memref<1x1x32xf32, #tpu.memory_space<vmem>>, %arg8: memref<1x1x32xf32, #tpu.memory_space<vmem>>, %arg9: memref<1x32x32xf32, #tpu.memory_space<vmem>>, %arg10: memref<1x1x32xf32, #tpu.memory_space<vmem>>, %arg11: memref<1x32x3xf32, #tpu.memory_space<vmem>>, %arg12: memref<1x1x3xf32, #tpu.memory_space<vmem>>, %arg13: memref<1x1x3xf32, #tpu.memory_space<vmem>>, %arg14: memref<1x1x3xf32, #tpu.memory_space<vmem>>, %arg15: memref<2x3xf32, #tpu.memory_space<vmem>>, %arg16: memref<16x32xf32, #tpu.memory_space<vmem>>) attributes {dimension_semantics = [#tpu.dimension_semantics<arbitrary>], iteration_bounds = array<i64: 2>, scalar_prefetch = 0 : i64, scratch_operands = 1 : i64, tpu.core_type = #tpu.core_type<tc>, window_params = [{transform_indices = @transform_0, window_bounds = array<i64: 2>}, {pipeline_mode = #tpu.pipeline_mode<synchronous>, transform_indices = @transform_1, window_bounds = array<i64: 16, 32>}, {pipeline_mode = #tpu.pipeline_mode<synchronous>, transform_indices = @transform_2, window_bounds = array<i64: 16, 16>}, {pipeline_mode = #tpu.pipeline_mode<synchronous>, transform_indices = @transform_3, window_bounds = array<i64: 2, 16>}, {transform_indices = @transform_4, window_bounds = array<i64: 1, 32, 32>}, {transform_indices = @transform_5, window_bounds = array<i64: 1, 1, 32>}, {transform_indices = @transform_6, window_bounds = array<i64: 1, 1, 32>}, {transform_indices = @transform_7, window_bounds = array<i64: 1, 1, 32>}, {transform_indices = @transform_8, window_bounds = array<i64: 1, 32, 32>}, {transform_indices = @transform_9, window_bounds = array<i64: 1, 1, 32>}, {transform_indices = @transform_10, window_bounds = array<i64: 1, 32, 3>}, {transform_indices = @transform_11, window_bounds = array<i64: 1, 1, 3>}, {transform_indices = @transform_12, window_bounds = array<i64: 1, 1, 3>}, {transform_indices = @transform_13, window_bounds = array<i64: 1, 1, 3>}, {pipeline_mode = #tpu.pipeline_mode<synchronous>, transform_indices = @transform_14, window_bounds = array<i64: 2, 3>}]} {
    %c0_i32 = arith.constant 0 : i32
    %0 = arith.cmpi eq, %arg0, %c0_i32 : i32
    %1 = arith.extui %0 : i1 to i32
    %c0_i32_0 = arith.constant 0 : i32
    %2 = arith.cmpi ne, %1, %c0_i32_0 : i32
    scf.if %2 {
      %c0_58 = arith.constant 0 : index
      %c0_59 = arith.constant 0 : index
      %97 = vector.load %arg2[%c0_58, %c0_59] : memref<16x32xf32, #tpu.memory_space<vmem>>, vector<16x32xf32>
      %c0_60 = arith.constant 0 : index
      %c0_61 = arith.constant 0 : index
      %98 = vector.load %arg16[%c0_60, %c0_61] : memref<16x32xf32, #tpu.memory_space<vmem>>, vector<16x32xf32>
      tpu.vector_store %arg16[%c0_60, %c0_61], %97 {strides = array<i32>} : memref<16x32xf32, #tpu.memory_space<vmem>>, vector<16x32xf32>,
      %cst_62 = arith.constant 0.000000e+00 : f32
      %99 = vector.broadcast %cst_62 : f32 to vector<2x3xf32>
      %c0_63 = arith.constant 0 : index
      %c0_64 = arith.constant 0 : index
      %100 = vector.load %arg15[%c0_63, %c0_64] : memref<2x3xf32, #tpu.memory_space<vmem>>, vector<2x3xf32>
      tpu.vector_store %arg15[%c0_63, %c0_64], %99 {strides = array<i32>} : memref<2x3xf32, #tpu.memory_space<vmem>>, vector<2x3xf32>,
    } else {
    }
    %c0 = arith.constant 0 : index
    %c0_1 = arith.constant 0 : index
    %3 = vector.load %arg16[%c0, %c0_1] : memref<16x32xf32, #tpu.memory_space<vmem>>, vector<16x32xf32>
    %c0_2 = arith.constant 0 : index
    %c0_3 = arith.constant 0 : index
    %4 = vector.load %arg3[%c0_2, %c0_3] : memref<16x16xf32, #tpu.memory_space<vmem>>, vector<16x16xf32>
    %cst = arith.constant dense<0.000000e+00> : vector<16x32xf32>
    %5 = tpu.matmul %4, %3, %cst {dimension_numbers = #tpu.dot_dimension_numbers<[1], [0], [0], [1], [0, 0, 1, 1], [], []>} : vector<16x16xf32>, vector<16x32xf32>, vector<16x32xf32> -> vector<16x32xf32>
    %6 = arith.index_cast %arg0 : i32 to index
    %7 = memref.load %arg1[%6] : memref<2xf32, #tpu.memory_space<smem>>
    %cst_4 = arith.constant 1.000000e+00 : f32
    %8 = arith.addf %cst_4, %7 : f32
    %9 = vector.broadcast %8 : f32 to vector<16x32xf32>
    %10 = arith.mulf %9, %3 : vector<16x32xf32>
    %11 = arith.addf %10, %5 : vector<16x32xf32>
    %c0_5 = arith.constant 0 : index
    %c0_6 = arith.constant 0 : index
    %c0_7 = arith.constant 0 : index
    %12 = vector.load %arg5[%c0_5, %c0_6, %c0_7] : memref<1x32x32xf32, #tpu.memory_space<vmem>>, vector<1x32x32xf32>
    %13 = vector.shape_cast %12 : vector<1x32x32xf32> to vector<32x32xf32>
    %cst_8 = arith.constant dense<0.000000e+00> : vector<16x32xf32>
    %14 = tpu.matmul %11, %13, %cst_8 {dimension_numbers = #tpu.dot_dimension_numbers<[1], [0], [0], [1], [0, 0, 1, 1], [], []>} : vector<16x32xf32>, vector<32x32xf32>, vector<16x32xf32> -> vector<16x32xf32>
    %c0_9 = arith.constant 0 : index
    %c0_10 = arith.constant 0 : index
    %c0_11 = arith.constant 0 : index
    %15 = vector.load %arg6[%c0_9, %c0_10, %c0_11] : memref<1x1x32xf32, #tpu.memory_space<vmem>>, vector<1x1x32xf32>
    %16 = vector.shape_cast %15 : vector<1x1x32xf32> to vector<1x32xf32>
    %17 = vector.broadcast %16 : vector<1x32xf32> to vector<16x32xf32>
    %18 = arith.addf %14, %17 : vector<16x32xf32>
    %cst_12 = arith.constant dense<0.000000e+00> : vector<32xf32>
    %19 = vector.multi_reduction <add>, %18, %cst_12 [0] : vector<16x32xf32> to vector<32xf32>
    %20 = vector.shape_cast %19 : vector<32xf32> to vector<1x32xf32>
    %cst_13 = arith.constant 1.600000e+01 : f32
    %21 = vector.broadcast %cst_13 : f32 to vector<1x32xf32>
    %22 = arith.divf %20, %21 : vector<1x32xf32>
    %23 = vector.broadcast %22 : vector<1x32xf32> to vector<16x32xf32>
    %24 = arith.subf %18, %23 : vector<16x32xf32>
    %25 = vector.broadcast %22 : vector<1x32xf32> to vector<16x32xf32>
    %26 = arith.subf %18, %25 : vector<16x32xf32>
    %27 = arith.mulf %24, %26 : vector<16x32xf32>
    %cst_14 = arith.constant dense<0.000000e+00> : vector<32xf32>
    %28 = vector.multi_reduction <add>, %27, %cst_14 [0] : vector<16x32xf32> to vector<32xf32>
    %29 = vector.shape_cast %28 : vector<32xf32> to vector<1x32xf32>
    %cst_15 = arith.constant 1.600000e+01 : f32
    %30 = vector.broadcast %cst_15 : f32 to vector<1x32xf32>
    %31 = arith.divf %29, %30 : vector<1x32xf32>
    %32 = vector.broadcast %22 : vector<1x32xf32> to vector<16x32xf32>
    %33 = arith.subf %18, %32 : vector<16x32xf32>
    %cst_16 = arith.constant 9.99999974E-6 : f32
    %34 = vector.broadcast %cst_16 : f32 to vector<1x32xf32>
    %35 = arith.addf %31, %34 : vector<1x32xf32>
    %36 = math.rsqrt %35 : vector<1x32xf32>
    %37 = vector.broadcast %36 : vector<1x32xf32> to vector<16x32xf32>
    %38 = arith.mulf %33, %37 : vector<16x32xf32>
    %c0_17 = arith.constant 0 : index
    %c0_18 = arith.constant 0 : index
    %c0_19 = arith.constant 0 : index
    %39 = vector.load %arg7[%c0_17, %c0_18, %c0_19] : memref<1x1x32xf32, #tpu.memory_space<vmem>>, vector<1x1x32xf32>
    %40 = vector.shape_cast %39 : vector<1x1x32xf32> to vector<1x32xf32>
    %41 = vector.broadcast %40 : vector<1x32xf32> to vector<16x32xf32>
    %42 = arith.mulf %38, %41 : vector<16x32xf32>
    %c0_20 = arith.constant 0 : index
    %c0_21 = arith.constant 0 : index
    %c0_22 = arith.constant 0 : index
    %43 = vector.load %arg8[%c0_20, %c0_21, %c0_22] : memref<1x1x32xf32, #tpu.memory_space<vmem>>, vector<1x1x32xf32>
    %44 = vector.shape_cast %43 : vector<1x1x32xf32> to vector<1x32xf32>
    %45 = vector.broadcast %44 : vector<1x32xf32> to vector<16x32xf32>
    %46 = arith.addf %42, %45 : vector<16x32xf32>
    %cst_23 = arith.constant 0.000000e+00 : f32
    %47 = vector.broadcast %cst_23 : f32 to vector<16x32xf32>
    %48 = arith.maximumf %46, %47 : vector<16x32xf32>
    %c0_24 = arith.constant 0 : index
    %c0_25 = arith.constant 0 : index
    %c0_26 = arith.constant 0 : index
    %49 = vector.load %arg9[%c0_24, %c0_25, %c0_26] : memref<1x32x32xf32, #tpu.memory_space<vmem>>, vector<1x32x32xf32>
    %50 = vector.shape_cast %49 : vector<1x32x32xf32> to vector<32x32xf32>
    %cst_27 = arith.constant dense<0.000000e+00> : vector<16x32xf32>
    %51 = tpu.matmul %48, %50, %cst_27 {dimension_numbers = #tpu.dot_dimension_numbers<[1], [0], [0], [1], [0, 0, 1, 1], [], []>} : vector<16x32xf32>, vector<32x32xf32>, vector<16x32xf32> -> vector<16x32xf32>
    %c0_28 = arith.constant 0 : index
    %c0_29 = arith.constant 0 : index
    %c0_30 = arith.constant 0 : index
    %52 = vector.load %arg10[%c0_28, %c0_29, %c0_30] : memref<1x1x32xf32, #tpu.memory_space<vmem>>, vector<1x1x32xf32>
    %53 = vector.shape_cast %52 : vector<1x1x32xf32> to vector<1x32xf32>
    %54 = vector.broadcast %53 : vector<1x32xf32> to vector<16x32xf32>
    %55 = arith.addf %51, %54 : vector<16x32xf32>
    %c0_31 = arith.constant 0 : index
    %c0_32 = arith.constant 0 : index
    %56 = vector.load %arg16[%c0_31, %c0_32] : memref<16x32xf32, #tpu.memory_space<vmem>>, vector<16x32xf32>
    tpu.vector_store %arg16[%c0_31, %c0_32], %55 {strides = array<i32>} : memref<16x32xf32, #tpu.memory_space<vmem>>, vector<16x32xf32>,
    %c0_33 = arith.constant 0 : index
    %c0_34 = arith.constant 0 : index
    %57 = vector.load %arg4[%c0_33, %c0_34] : memref<2x16xf32, #tpu.memory_space<vmem>>, vector<2x16xf32>
    %cst_35 = arith.constant dense<0.000000e+00> : vector<2x32xf32>
    %58 = tpu.matmul %57, %55, %cst_35 {dimension_numbers = #tpu.dot_dimension_numbers<[1], [0], [0], [1], [0, 0, 1, 1], [], []>} : vector<2x16xf32>, vector<16x32xf32>, vector<2x32xf32> -> vector<2x32xf32>
    %c0_36 = arith.constant 0 : index
    %c0_37 = arith.constant 0 : index
    %c0_38 = arith.constant 0 : index
    %59 = vector.load %arg11[%c0_36, %c0_37, %c0_38] : memref<1x32x3xf32, #tpu.memory_space<vmem>>, vector<1x32x3xf32>
    %60 = vector.shape_cast %59 : vector<1x32x3xf32> to vector<32x3xf32>
    %cst_39 = arith.constant dense<0.000000e+00> : vector<2x3xf32>
    %61 = tpu.matmul %58, %60, %cst_39 {dimension_numbers = #tpu.dot_dimension_numbers<[1], [0], [0], [1], [0, 0, 1, 1], [], []>} : vector<2x32xf32>, vector<32x3xf32>, vector<2x3xf32> -> vector<2x3xf32>
    %c0_40 = arith.constant 0 : index
    %c0_41 = arith.constant 0 : index
    %c0_42 = arith.constant 0 : index
    %62 = vector.load %arg12[%c0_40, %c0_41, %c0_42] : memref<1x1x3xf32, #tpu.memory_space<vmem>>, vector<1x1x3xf32>
    %63 = vector.shape_cast %62 : vector<1x1x3xf32> to vector<1x3xf32>
    %64 = vector.broadcast %63 : vector<1x3xf32> to vector<2x3xf32>
    %65 = arith.addf %61, %64 : vector<2x3xf32>
    %cst_43 = arith.constant dense<0.000000e+00> : vector<3xf32>
    %66 = vector.multi_reduction <add>, %65, %cst_43 [0] : vector<2x3xf32> to vector<3xf32>
    %67 = vector.shape_cast %66 : vector<3xf32> to vector<1x3xf32>
    %cst_44 = arith.constant 2.000000e+00 : f32
    %68 = vector.broadcast %cst_44 : f32 to vector<1x3xf32>
    %69 = arith.divf %67, %68 : vector<1x3xf32>
    %70 = vector.broadcast %69 : vector<1x3xf32> to vector<2x3xf32>
    %71 = arith.subf %65, %70 : vector<2x3xf32>
    %72 = vector.broadcast %69 : vector<1x3xf32> to vector<2x3xf32>
    %73 = arith.subf %65, %72 : vector<2x3xf32>
    %74 = arith.mulf %71, %73 : vector<2x3xf32>
    %cst_45 = arith.constant dense<0.000000e+00> : vector<3xf32>
    %75 = vector.multi_reduction <add>, %74, %cst_45 [0] : vector<2x3xf32> to vector<3xf32>
    %76 = vector.shape_cast %75 : vector<3xf32> to vector<1x3xf32>
    %cst_46 = arith.constant 2.000000e+00 : f32
    %77 = vector.broadcast %cst_46 : f32 to vector<1x3xf32>
    %78 = arith.divf %76, %77 : vector<1x3xf32>
    %79 = vector.broadcast %69 : vector<1x3xf32> to vector<2x3xf32>
    %80 = arith.subf %65, %79 : vector<2x3xf32>
    %cst_47 = arith.constant 9.99999974E-6 : f32
    %81 = vector.broadcast %cst_47 : f32 to vector<1x3xf32>
    %82 = arith.addf %78, %81 : vector<1x3xf32>
    %83 = math.rsqrt %82 : vector<1x3xf32>
    %84 = vector.broadcast %83 : vector<1x3xf32> to vector<2x3xf32>
    %85 = arith.mulf %80, %84 : vector<2x3xf32>
    %c0_48 = arith.constant 0 : index
    %c0_49 = arith.constant 0 : index
    %c0_50 = arith.constant 0 : index
    %86 = vector.load %arg13[%c0_48, %c0_49, %c0_50] : memref<1x1x3xf32, #tpu.memory_space<vmem>>, vector<1x1x3xf32>
    %87 = vector.shape_cast %86 : vector<1x1x3xf32> to vector<1x3xf32>
    %88 = vector.broadcast %87 : vector<1x3xf32> to vector<2x3xf32>
    %89 = arith.mulf %85, %88 : vector<2x3xf32>
    %c0_51 = arith.constant 0 : index
    %c0_52 = arith.constant 0 : index
    %c0_53 = arith.constant 0 : index
    %90 = vector.load %arg14[%c0_51, %c0_52, %c0_53] : memref<1x1x3xf32, #tpu.memory_space<vmem>>, vector<1x1x3xf32>
    %91 = vector.shape_cast %90 : vector<1x1x3xf32> to vector<1x3xf32>
    %92 = vector.broadcast %91 : vector<1x3xf32> to vector<2x3xf32>
    %93 = arith.addf %89, %92 : vector<2x3xf32>
    %c0_54 = arith.constant 0 : index
    %c0_55 = arith.constant 0 : index
    %94 = vector.load %arg15[%c0_54, %c0_55] : memref<2x3xf32, #tpu.memory_space<vmem>>, vector<2x3xf32>
    %95 = arith.addf %94, %93 : vector<2x3xf32>
    %c0_56 = arith.constant 0 : index
    %c0_57 = arith.constant 0 : index
    %96 = vector.load %arg15[%c0_56, %c0_57] : memref<2x3xf32, #tpu.memory_space<vmem>>, vector<2x3xf32>
    tpu.vector_store %arg15[%c0_56, %c0_57], %95 {strides = array<i32>} : memref<2x3xf32, #tpu.memory_space<vmem>>, vector<2x3xf32>,
    return
  }
  func.func @transform_0(%arg0: i32) -> i32 {
    %c0_i32 = arith.constant 0 : i32
    %c0_i32_0 = arith.constant 0 : i32
    return %c0_i32 : i32
  }
  func.func @transform_1(%arg0: i32) -> (i32, i32) {
    %c0_i32 = arith.constant 0 : i32
    %c0_i32_0 = arith.constant 0 : i32
    %c0_i32_1 = arith.constant 0 : i32
    return %c0_i32, %c0_i32_0 : i32, i32
  }
  func.func @transform_2(%arg0: i32) -> (i32, i32) {
    %c0_i32 = arith.constant 0 : i32
    %c0_i32_0 = arith.constant 0 : i32
    %c0_i32_1 = arith.constant 0 : i32
    return %c0_i32, %c0_i32_0 : i32, i32
  }
  func.func @transform_3(%arg0: i32) -> (i32, i32) {
    %c0_i32 = arith.constant 0 : i32
    %c0_i32_0 = arith.constant 0 : i32
    %c0_i32_1 = arith.constant 0 : i32
    return %c0_i32, %c0_i32_0 : i32, i32
  }
  func.func @transform_4(%arg0: i32) -> (i32, i32, i32) {
    %c0_i32 = arith.constant 0 : i32
    %c0_i32_0 = arith.constant 0 : i32
    %c0_i32_1 = arith.constant 0 : i32
    return %arg0, %c0_i32, %c0_i32_0 : i32, i32, i32
  }
  func.func @transform_5(%arg0: i32) -> (i32, i32, i32) {
    %c0_i32 = arith.constant 0 : i32
    %c0_i32_0 = arith.constant 0 : i32
    %c0_i32_1 = arith.constant 0 : i32
    return %arg0, %c0_i32, %c0_i32_0 : i32, i32, i32
  }
  func.func @transform_6(%arg0: i32) -> (i32, i32, i32) {
    %c0_i32 = arith.constant 0 : i32
    %c0_i32_0 = arith.constant 0 : i32
    %c0_i32_1 = arith.constant 0 : i32
    return %arg0, %c0_i32, %c0_i32_0 : i32, i32, i32
  }
  func.func @transform_7(%arg0: i32) -> (i32, i32, i32) {
    %c0_i32 = arith.constant 0 : i32
    %c0_i32_0 = arith.constant 0 : i32
    %c0_i32_1 = arith.constant 0 : i32
    return %arg0, %c0_i32, %c0_i32_0 : i32, i32, i32
  }
  func.func @transform_8(%arg0: i32) -> (i32, i32, i32) {
    %c0_i32 = arith.constant 0 : i32
    %c0_i32_0 = arith.constant 0 : i32
    %c0_i32_1 = arith.constant 0 : i32
    return %arg0, %c0_i32, %c0_i32_0 : i32, i32, i32
  }
  func.func @transform_9(%arg0: i32) -> (i32, i32, i32) {
    %c0_i32 = arith.constant 0 : i32
    %c0_i32_0 = arith.constant 0 : i32
    %c0_i32_1 = arith.constant 0 : i32
    return %arg0, %c0_i32, %c0_i32_0 : i32, i32, i32
  }
  func.func @transform_10(%arg0: i32) -> (i32, i32, i32) {
    %c0_i32 = arith.constant 0 : i32
    %c0_i32_0 = arith.constant 0 : i32
    %c0_i32_1 = arith.constant 0 : i32
    return %arg0, %c0_i32, %c0_i32_0 : i32, i32, i32
  }
  func.func @transform_11(%arg0: i32) -> (i32, i32, i32) {
    %c0_i32 = arith.constant 0 : i32
    %c0_i32_0 = arith.constant 0 : i32
    %c0_i32_1 = arith.constant 0 : i32
    return %arg0, %c0_i32, %c0_i32_0 : i32, i32, i32
  }
  func.func @transform_12(%arg0: i32) -> (i32, i32, i32) {
    %c0_i32 = arith.constant 0 : i32
    %c0_i32_0 = arith.constant 0 : i32
    %c0_i32_1 = arith.constant 0 : i32
    return %arg0, %c0_i32, %c0_i32_0 : i32, i32, i32
  }
  func.func @transform_13(%arg0: i32) -> (i32, i32, i32) {
    %c0_i32 = arith.constant 0 : i32
    %c0_i32_0 = arith.constant 0 : i32
    %c0_i32_1 = arith.constant 0 : i32
    return %arg0, %c0_i32, %c0_i32_0 : i32, i32, i32
  }
  func.func @transform_14(%arg0: i32) -> (i32, i32) {
    %c0_i32 = arith.constant 0 : i32
    %c0_i32_0 = arith.constant 0 : i32
    %c0_i32_1 = arith.constant 0 : i32
    return %c0_i32, %c0_i32_0 : i32, i32
  }
}

</mosaic_0001>

<llo_original>
// kernel: gnn_forward.1
$region0: #{gnn_forward.1}
  #allocation0 [shape = 'u32[]', space=smem, size = 0x4, offset = 0x4, fixed_abs, tag = 'smem constant byte address 0x4 - core index']
  #allocation1 [shape = 'u32[72,128]{1,0:T(1,128)}', space=vmem, size = 0x9000, scoped, tag = 'internal scratch']
  #allocation2 [shape = 'f32[16,32]{1,0:T(8,128)}', space=vmem, size = 0x2000, scoped, tag = 'scratch operand']
  %s0 = inlined_call_operand.vmem [shape: f32[2], index: 0, kind: input, shape index: {}]
  %s1 = inlined_call_operand.vmem [shape: f32[16,32], index: 1, kind: input, shape index: {}]
  %s2 = inlined_call_operand.vmem [shape: f32[16,16], index: 2, kind: input, shape index: {}]
  %s3 = inlined_call_operand.vmem [shape: f32[2,16], index: 3, kind: input, shape index: {}]
  %s4 = inlined_call_operand.vmem [shape: f32[2,32,32], index: 4, kind: input, shape index: {}]
  %s5 = inlined_call_operand.vmem [shape: f32[2,1,32], index: 5, kind: input, shape index: {}]
  %s6 = inlined_call_operand.vmem [shape: f32[2,1,32], index: 6, kind: input, shape index: {}]
  %s7 = inlined_call_operand.vmem [shape: f32[2,1,32], index: 7, kind: input, shape index: {}]
  %s8 = inlined_call_operand.vmem [shape: f32[2,32,32], index: 8, kind: input, shape index: {}]
  %s9 = inlined_call_operand.vmem [shape: f32[2,1,32], index: 9, kind: input, shape index: {}]
  %s10 = inlined_call_operand.vmem [shape: f32[2,32,3], index: 10, kind: input, shape index: {}]
  %s11 = inlined_call_operand.vmem [shape: f32[2,1,3], index: 11, kind: input, shape index: {}]
  %s12 = inlined_call_operand.vmem [shape: f32[2,1,3], index: 12, kind: input, shape index: {}]
  %s13 = inlined_call_operand.vmem [shape: f32[2,1,3], index: 13, kind: input, shape index: {}]
  %s14 = inlined_call_operand.hbm [shape: f32[2,3], index: 14, kind: output, shape index: {}]
  %s15 = sld [smem:[#allocation0]]
  $region97: #{gnn_forward.1} parent=0
    _
  %s17 = ssub.s32 1, %s15
  %s18 = scalar_select 0, %s17, %s15
  $region1: #{gnn_forward.1} parent=0
    #allocation3 [shape = 'u8[512]{0}', space=smem, size = 0x200, scoped, tag = 'input window, operand 0, single buffered']
    #allocation4 [shape = 's32[2]{0}', space=sflag, size = 0x8, scoped, tag = 'scoped memory for gnn_forward.1']
    #allocation5 [shape = 's32[2]{0}', space=sflag, size = 0x8, scoped, tag = 'scoped memory for gnn_forward.1']
    #allocation6 [shape = 'u8[1024]{0}', space=vmem, size = 0x400, scoped, tag = 'output window, operand 0, single buffered']
    %19 = vsyncpa [#allocation5], 0
    %20 = vsyncpa [#allocation4], 0
    loop: start=0, step=1, limit=4
    $region2: #{gnn_forward.1} parent=1 // loop_pre_header
      _
    $region3: #{gnn_forward.1} parent=1 // loop_header
      %s22 = sphi 0, %s26
      %p23 = scmp.ge.s32.totalorder %s22, 4
      %s30 = sphi 0, %s30
      %s32 = sphi 0, %s30
      %s33 = sphi 0, %s32
      %s47 = sphi 0, %s33
      %s51 = sphi 0, %s51
      %s53 = sphi 0, %s51
      %s54 = sphi 0, %s53
      %s68 = sphi 0, %s54
      %s72 = sphi 0, %s72
      %s74 = sphi 0, %s72
      %s75 = sphi 0, %s74
      %s89 = sphi 0, %s75
      %s93 = sphi 0, %s93
      %s95 = sphi 0, %s93
      %s96 = sphi 0, %s95
      %s110 = sphi 0, %s96
      %s116 = sphi 0, %s118
      %s119 = sphi 0, %s116
      %s120 = sphi 0, %s119
      %s136 = sphi 0, %s120
      %s142 = sphi 0, %s144
      %s145 = sphi 0, %s142
      %s146 = sphi 0, %s145
      %s162 = sphi 0, %s146
      %s168 = sphi 0, %s170
      %s171 = sphi 0, %s168
      %s172 = sphi 0, %s171
      %s188 = sphi 0, %s172
      %s194 = sphi 0, %s196
      %s197 = sphi 0, %s194
      %s198 = sphi 0, %s197
      %s214 = sphi 0, %s198
      %s220 = sphi 0, %s222
      %s223 = sphi 0, %s220
      %s224 = sphi 0, %s223
      %s240 = sphi 0, %s224
      %s246 = sphi 0, %s248
      %s249 = sphi 0, %s246
      %s250 = sphi 0, %s249
      %s266 = sphi 0, %s250
      %s272 = sphi 0, %s274
      %s275 = sphi 0, %s272
      %s276 = sphi 0, %s275
      %s292 = sphi 0, %s276
      %s298 = sphi 0, %s300
      %s301 = sphi 0, %s298
      %s302 = sphi 0, %s301
      %s318 = sphi 0, %s302
      %s324 = sphi 0, %s326
      %s327 = sphi 0, %s324
      %s328 = sphi 0, %s327
      %s344 = sphi 0, %s328
      %s350 = sphi 0, %s352
      %s353 = sphi 0, %s350
      %s354 = sphi 0, %s353
      %s370 = sphi 0, %s354
      %s374 = sphi 0, %s374
      %s376 = sphi 0, %s374
      %s377 = sphi 0, %s376
      %s391 = sphi 0, %s377
    $region4: #{gnn_forward.1} parent=1 // loop_header_branch
      %25 = sbr.rel (%p23) target = $region8
    $region5: #{gnn_forward.1} parent=1 // loop_body
      %s27 = ssub.s32 %s22, 1
      %s28 = ssub.s32 %s22, 2
      %s29 = sadd.s32 %s22, 1
      %s31 = sadd.s32 %s30, 1
      %p34 = scmp.eq.s32.totalorder %s22, 1
      %p35 = scmp.ne.s32.totalorder %s30, %s32
      %p36 = scmp.eq.s32.totalorder %s22, 0
      %p37 = por %p35, %p36
      %p38 = scmp.ne.s32.totalorder %s30, %s32
      %p39 = scmp.eq.s32.totalorder %s27, 1
      %p40 = por %p38, %p39
      %p41 = scmp.ne.s32.totalorder %s32, %s33
      %p42 = scmp.eq.s32.totalorder %s27, 0
      %p43 = por %p41, %p42
      %p44 = scmp.ne.s32.totalorder %s32, %s33
      %p45 = scmp.eq.s32.totalorder %s28, 1
      %p46 = por %p44, %p45
      %p48 = scmp.ne.s32.totalorder %s33, %s47
      %p49 = scmp.eq.s32.totalorder %s28, 0
      %p50 = por %p48, %p49
      %s52 = sadd.s32 %s51, 1
      %p55 = scmp.eq.s32.totalorder %s22, 1
      %p56 = scmp.ne.s32.totalorder %s51, %s53
      %p57 = scmp.eq.s32.totalorder %s22, 0
      %p58 = por %p56, %p57
      %p59 = scmp.ne.s32.totalorder %s51, %s53
      %p60 = scmp.eq.s32.totalorder %s27, 1
      %p61 = por %p59, %p60
      %p62 = scmp.ne.s32.totalorder %s53, %s54
      %p63 = scmp.eq.s32.totalorder %s27, 0
      %p64 = por %p62, %p63
      %p65 = scmp.ne.s32.totalorder %s53, %s54
      %p66 = scmp.eq.s32.totalorder %s28, 1
      %p67 = por %p65, %p66
      %p69 = scmp.ne.s32.totalorder %s54, %s68
      %p70 = scmp.eq.s32.totalorder %s28, 0
      %p71 = por %p69, %p70
      %s73 = sadd.s32 %s72, 1
      %p76 = scmp.eq.s32.totalorder %s22, 1
      %p77 = scmp.ne.s32.totalorder %s72, %s74
      %p78 = scmp.eq.s32.totalorder %s22, 0
      %p79 = por %p77, %p78
      %p80 = scmp.ne.s32.totalorder %s72, %s74
      %p81 = scmp.eq.s32.totalorder %s27, 1
      %p82 = por %p80, %p81
      %p83 = scmp.ne.s32.totalorder %s74, %s75
      %p84 = scmp.eq.s32.totalorder %s27, 0
      %p85 = por %p83, %p84
      %p86 = scmp.ne.s32.totalorder %s74, %s75
      %p87 = scmp.eq.s32.totalorder %s28, 1
      %p88 = por %p86, %p87
      %p90 = scmp.ne.s32.totalorder %s75, %s89
      %p91 = scmp.eq.s32.totalorder %s28, 0
      %p92 = por %p90, %p91
      %s94 = sadd.s32 %s93, 1
      %p97 = scmp.eq.s32.totalorder %s22, 1
      %p98 = scmp.ne.s32.totalorder %s93, %s95
      %p99 = scmp.eq.s32.totalorder %s22, 0
      %p100 = por %p98, %p99
      %p101 = scmp.ne.s32.totalorder %s93, %s95
      %p102 = scmp.eq.s32.totalorder %s27, 1
      %p103 = por %p101, %p102
      %p104 = scmp.ne.s32.totalorder %s95, %s96
      %p105 = scmp.eq.s32.totalorder %s27, 0
      %p106 = por %p104, %p105
      %p107 = scmp.ne.s32.totalorder %s95, %s96
      %p108 = scmp.eq.s32.totalorder %s28, 1
      %p109 = por %p107, %p108
      %p111 = scmp.ne.s32.totalorder %s96, %s110
      %p112 = scmp.eq.s32.totalorder %s28, 0
      %p113 = por %p111, %p112
      %s114 = ssub.s32 %s22, %s29
      %p115 = scmp.eq.s32.totalorder %s114, 0
      %s117 = sadd.s32 %s116, 1
      %s118 = scalar_select %p115, %s116, %s117
      %p121 = pneg %p115
      %p122 = scmp.eq.s32.totalorder %s22, 1
      %p123 = por %p121, %p122
      %p124 = scmp.ne.s32.totalorder %s116, %s119
      %p125 = scmp.eq.s32.totalorder %s22, 0
      %p126 = por %p124, %p125
      %p127 = scmp.ne.s32.totalorder %s116, %s119
      %p128 = scmp.eq.s32.totalorder %s27, 1
      %p129 = por %p127, %p128
      %p130 = scmp.ne.s32.totalorder %s119, %s120
      %p131 = scmp.eq.s32.totalorder %s27, 0
      %p132 = por %p130, %p131
      %p133 = scmp.ne.s32.totalorder %s119, %s120
      %p134 = scmp.eq.s32.totalorder %s28, 1
      %p135 = por %p133, %p134
      %p137 = scmp.ne.s32.totalorder %s120, %s136
      %p138 = scmp.eq.s32.totalorder %s28, 0
      %p139 = por %p137, %p138
      %s140 = ssub.s32 %s22, %s29
      %p141 = scmp.eq.s32.totalorder %s140, 0
      %s143 = sadd.s32 %s142, 1
      %s144 = scalar_select %p141, %s142, %s143
      %p147 = pneg %p141
      %p148 = scmp.eq.s32.totalorder %s22, 1
      %p149 = por %p147, %p148
      %p150 = scmp.ne.s32.totalorder %s142, %s145
      %p151 = scmp.eq.s32.totalorder %s22, 0
      %p152 = por %p150, %p151
      %p153 = scmp.ne.s32.totalorder %s142, %s145
      %p154 = scmp.eq.s32.totalorder %s27, 1
      %p155 = por %p153, %p154
      %p156 = scmp.ne.s32.totalorder %s145, %s146
      %p157 = scmp.eq.s32.totalorder %s27, 0
      %p158 = por %p156, %p157
      %p159 = scmp.ne.s32.totalorder %s145, %s146
      %p160 = scmp.eq.s32.totalorder %s28, 1
      %p161 = por %p159, %p160
      %p163 = scmp.ne.s32.totalorder %s146, %s162
      %p164 = scmp.eq.s32.totalorder %s28, 0
      %p165 = por %p163, %p164
      %s166 = ssub.s32 %s22, %s29
      %p167 = scmp.eq.s32.totalorder %s166, 0
      %s169 = sadd.s32 %s168, 1
      %s170 = scalar_select %p167, %s168, %s169
      %p173 = pneg %p167
      %p174 = scmp.eq.s32.totalorder %s22, 1
      %p175 = por %p173, %p174
      %p176 = scmp.ne.s32.totalorder %s168, %s171
      %p177 = scmp.eq.s32.totalorder %s22, 0
      %p178 = por %p176, %p177
      %p179 = scmp.ne.s32.totalorder %s168, %s171
      %p180 = scmp.eq.s32.totalorder %s27, 1
      %p181 = por %p179, %p180
      %p182 = scmp.ne.s32.totalorder %s171, %s172
      %p183 = scmp.eq.s32.totalorder %s27, 0
      %p184 = por %p182, %p183
      %p185 = scmp.ne.s32.totalorder %s171, %s172
      %p186 = scmp.eq.s32.totalorder %s28, 1
      %p187 = por %p185, %p186
      %p189 = scmp.ne.s32.totalorder %s172, %s188
      %p190 = scmp.eq.s32.totalorder %s28, 0
      %p191 = por %p189, %p190
      %s192 = ssub.s32 %s22, %s29
      %p193 = scmp.eq.s32.totalorder %s192, 0
      %s195 = sadd.s32 %s194, 1
      %s196 = scalar_select %p193, %s194, %s195
      %p199 = pneg %p193
      %p200 = scmp.eq.s32.totalorder %s22, 1
      %p201 = por %p199, %p200
      %p202 = scmp.ne.s32.totalorder %s194, %s197
      %p203 = scmp.eq.s32.totalorder %s22, 0
      %p204 = por %p202, %p203
      %p205 = scmp.ne.s32.totalorder %s194, %s197
      %p206 = scmp.eq.s32.totalorder %s27, 1
      %p207 = por %p205, %p206
      %p208 = scmp.ne.s32.totalorder %s197, %s198
      %p209 = scmp.eq.s32.totalorder %s27, 0
      %p210 = por %p208, %p209
      %p211 = scmp.ne.s32.totalorder %s197, %s198
      %p212 = scmp.eq.s32.totalorder %s28, 1
      %p213 = por %p211, %p212
      %p215 = scmp.ne.s32.totalorder %s198, %s214
      %p216 = scmp.eq.s32.totalorder %s28, 0
      %p217 = por %p215, %p216
      %s218 = ssub.s32 %s22, %s29
      %p219 = scmp.eq.s32.totalorder %s218, 0
      %s221 = sadd.s32 %s220, 1
      %s222 = scalar_select %p219, %s220, %s221
      %p225 = pneg %p219
      %p226 = scmp.eq.s32.totalorder %s22, 1
      %p227 = por %p225, %p226
      %p228 = scmp.ne.s32.totalorder %s220, %s223
      %p229 = scmp.eq.s32.totalorder %s22, 0
      %p230 = por %p228, %p229
      %p231 = scmp.ne.s32.totalorder %s220, %s223
      %p232 = scmp.eq.s32.totalorder %s27, 1
      %p233 = por %p231, %p232
      %p234 = scmp.ne.s32.totalorder %s223, %s224
      %p235 = scmp.eq.s32.totalorder %s27, 0
      %p236 = por %p234, %p235
      %p237 = scmp.ne.s32.totalorder %s223, %s224
      %p238 = scmp.eq.s32.totalorder %s28, 1
      %p239 = por %p237, %p238
      %p241 = scmp.ne.s32.totalorder %s224, %s240
      %p242 = scmp.eq.s32.totalorder %s28, 0
      %p243 = por %p241, %p242
      %s244 = ssub.s32 %s22, %s29
      %p245 = scmp.eq.s32.totalorder %s244, 0
      %s247 = sadd.s32 %s246, 1
      %s248 = scalar_select %p245, %s246, %s247
      %p251 = pneg %p245
      %p252 = scmp.eq.s32.totalorder %s22, 1
      %p253 = por %p251, %p252
      %p254 = scmp.ne.s32.totalorder %s246, %s249
      %p255 = scmp.eq.s32.totalorder %s22, 0
      %p256 = por %p254, %p255
      %p257 = scmp.ne.s32.totalorder %s246, %s249
      %p258 = scmp.eq.s32.totalorder %s27, 1
      %p259 = por %p257, %p258
      %p260 = scmp.ne.s32.totalorder %s249, %s250
      %p261 = scmp.eq.s32.totalorder %s27, 0
      %p262 = por %p260, %p261
      %p263 = scmp.ne.s32.totalorder %s249, %s250
      %p264 = scmp.eq.s32.totalorder %s28, 1
      %p265 = por %p263, %p264
      %p267 = scmp.ne.s32.totalorder %s250, %s266
      %p268 = scmp.eq.s32.totalorder %s28, 0
      %p269 = por %p267, %p268
      %s270 = ssub.s32 %s22, %s29
      %p271 = scmp.eq.s32.totalorder %s270, 0
      %s273 = sadd.s32 %s272, 1
      %s274 = scalar_select %p271, %s272, %s273
      %p277 = pneg %p271
      %p278 = scmp.eq.s32.totalorder %s22, 1
      %p279 = por %p277, %p278
      %p280 = scmp.ne.s32.totalorder %s272, %s275
      %p281 = scmp.eq.s32.totalorder %s22, 0
      %p282 = por %p280, %p281
      %p283 = scmp.ne.s32.totalorder %s272, %s275
      %p284 = scmp.eq.s32.totalorder %s27, 1
      %p285 = por %p283, %p284
      %p286 = scmp.ne.s32.totalorder %s275, %s276
      %p287 = scmp.eq.s32.totalorder %s27, 0
      %p288 = por %p286, %p287
      %p289 = scmp.ne.s32.totalorder %s275, %s276
      %p290 = scmp.eq.s32.totalorder %s28, 1
      %p291 = por %p289, %p290
      %p293 = scmp.ne.s32.totalorder %s276, %s292
      %p294 = scmp.eq.s32.totalorder %s28, 0
      %p295 = por %p293, %p294
      %s296 = ssub.s32 %s22, %s29
      %p297 = scmp.eq.s32.totalorder %s296, 0
      %s299 = sadd.s32 %s298, 1
      %s300 = scalar_select %p297, %s298, %s299
      %p303 = pneg %p297
      %p304 = scmp.eq.s32.totalorder %s22, 1
      %p305 = por %p303, %p304
      %p306 = scmp.ne.s32.totalorder %s298, %s301
      %p307 = scmp.eq.s32.totalorder %s22, 0
      %p308 = por %p306, %p307
      %p309 = scmp.ne.s32.totalorder %s298, %s301
      %p310 = scmp.eq.s32.totalorder %s27, 1
      %p311 = por %p309, %p310
      %p312 = scmp.ne.s32.totalorder %s301, %s302
      %p313 = scmp.eq.s32.totalorder %s27, 0
      %p314 = por %p312, %p313
      %p315 = scmp.ne.s32.totalorder %s301, %s302
      %p316 = scmp.eq.s32.totalorder %s28, 1
      %p317 = por %p315, %p316
      %p319 = scmp.ne.s32.totalorder %s302, %s318
      %p320 = scmp.eq.s32.totalorder %s28, 0
      %p321 = por %p319, %p320
      %s322 = ssub.s32 %s22, %s29
      %p323 = scmp.eq.s32.totalorder %s322, 0
      %s325 = sadd.s32 %s324, 1
      %s326 = scalar_select %p323, %s324, %s325
      %p329 = pneg %p323
      %p330 = scmp.eq.s32.totalorder %s22, 1
      %p331 = por %p329, %p330
      %p332 = scmp.ne.s32.totalorder %s324, %s327
      %p333 = scmp.eq.s32.totalorder %s22, 0
      %p334 = por %p332, %p333
      %p335 = scmp.ne.s32.totalorder %s324, %s327
      %p336 = scmp.eq.s32.totalorder %s27, 1
      %p337 = por %p335, %p336
      %p338 = scmp.ne.s32.totalorder %s327, %s328
      %p339 = scmp.eq.s32.totalorder %s27, 0
      %p340 = por %p338, %p339
      %p341 = scmp.ne.s32.totalorder %s327, %s328
      %p342 = scmp.eq.s32.totalorder %s28, 1
      %p343 = por %p341, %p342
      %p345 = scmp.ne.s32.totalorder %s328, %s344
      %p346 = scmp.eq.s32.totalorder %s28, 0
      %p347 = por %p345, %p346
      %s348 = ssub.s32 %s22, %s29
      %p349 = scmp.eq.s32.totalorder %s348, 0
      %s351 = sadd.s32 %s350, 1
      %s352 = scalar_select %p349, %s350, %s351
      %p355 = pneg %p349
      %p356 = scmp.eq.s32.totalorder %s22, 1
      %p357 = por %p355, %p356
      %p358 = scmp.ne.s32.totalorder %s350, %s353
      %p359 = scmp.eq.s32.totalorder %s22, 0
      %p360 = por %p358, %p359
      %p361 = scmp.ne.s32.totalorder %s350, %s353
      %p362 = scmp.eq.s32.totalorder %s27, 1
      %p363 = por %p361, %p362
      %p364 = scmp.ne.s32.totalorder %s353, %s354
      %p365 = scmp.eq.s32.totalorder %s27, 0
      %p366 = por %p364, %p365
      %p367 = scmp.ne.s32.totalorder %s353, %s354
      %p368 = scmp.eq.s32.totalorder %s28, 1
      %p369 = por %p367, %p368
      %p371 = scmp.ne.s32.totalorder %s354, %s370
      %p372 = scmp.eq.s32.totalorder %s28, 0
      %p373 = por %p371, %p372
      %s375 = sadd.s32 %s374, 1
      %p378 = scmp.eq.s32.totalorder %s22, 1
      %p379 = scmp.ne.s32.totalorder %s374, %s376
      %p380 = scmp.eq.s32.totalorder %s22, 0
      %p381 = por %p379, %p380
      %p382 = scmp.ne.s32.totalorder %s374, %s376
      %p383 = scmp.eq.s32.totalorder %s27, 1
      %p384 = por %p382, %p383
      %p385 = scmp.ne.s32.totalorder %s376, %s377
      %p386 = scmp.eq.s32.totalorder %s27, 0
      %p387 = por %p385, %p386
      %p388 = scmp.ne.s32.totalorder %s376, %s377
      %p389 = scmp.eq.s32.totalorder %s28, 1
      %p390 = por %p388, %p389
      %p392 = scmp.ne.s32.totalorder %s377, %s391
      %p393 = scmp.eq.s32.totalorder %s28, 0
      %p394 = por %p392, %p393
      %p395 = scmp.le.s32.totalorder 1, %s22
      %p396 = scmp.lt.s32.totalorder %s22, 3
      %p397 = pnand %p395, %p396
      %p398 = pneg %p397
      // Predicated region
      $region9: #{gnn_forward.1} parent=5 // pred_check
        _
      $region10: #{gnn_forward.1} parent=5 // pred_check_branch
        %400 = sbr.rel (%p397) target = $region12
      $region11: #{gnn_forward.1} parent=5 // pred_region
        %s401 = ssub.s32 %s22, 1
        // Predicated region
        $region13: #{gnn_forward.1} parent=11 // pred_check
          %p402 = pneg %p43
        $region14: #{gnn_forward.1} parent=11 // pred_check_branch
          %404 = sbr.rel (%p402) target = $region16
        $region15: #{gnn_forward.1} parent=11 // pred_region
          %406 = vsyncadd [#allocation5], 0
          %s408 = sshll.u32 %s0, 4
          %s409 = int_to_ptr.vmem [resolvable:$true] %s408
          %411 = dma.vmem_to_smem %s409, 16, [#allocation3], [#allocation5]
        $region16: #{gnn_forward.1} parent=11 // pred_fallthru
          _
        // Predicated region
        $region17: #{gnn_forward.1} parent=11 // pred_check
          %p412 = pneg %p64
        $region18: #{gnn_forward.1} parent=11 // pred_check_branch
          %414 = sbr.rel (%p412) target = $region20
        $region19: #{gnn_forward.1} parent=11 // pred_region
          _
        $region20: #{gnn_forward.1} parent=11 // pred_fallthru
          _
        // Predicated region
        $region21: #{gnn_forward.1} parent=11 // pred_check
          %p415 = pneg %p85
        $region22: #{gnn_forward.1} parent=11 // pred_check_branch
          %417 = sbr.rel (%p415) target = $region24
        $region23: #{gnn_forward.1} parent=11 // pred_region
          _
        $region24: #{gnn_forward.1} parent=11 // pred_fallthru
          _
        // Predicated region
        $region25: #{gnn_forward.1} parent=11 // pred_check
          %p418 = pneg %p106
        $region26: #{gnn_forward.1} parent=11 // pred_check_branch
          %420 = sbr.rel (%p418) target = $region28
        $region27: #{gnn_forward.1} parent=11 // pred_region
          _
        $region28: #{gnn_forward.1} parent=11 // pred_fallthru
          _
      $region12: #{gnn_forward.1} parent=5 // pred_fallthru
        _
      %p421 = scmp.lt.s32.totalorder %s22, 2
      // Predicated region
      $region29: #{gnn_forward.1} parent=5 // pred_check
        %p422 = pneg %p421
      $region30: #{gnn_forward.1} parent=5 // pred_check_branch
        %424 = sbr.rel (%p422) target = $region32
      $region31: #{gnn_forward.1} parent=5 // pred_region
        // Predicated region
        $region33: #{gnn_forward.1} parent=31 // pred_check
          %p425 = pneg %p126
        $region34: #{gnn_forward.1} parent=31 // pred_check_branch
          %427 = sbr.rel (%p425) target = $region36
        $region35: #{gnn_forward.1} parent=31 // pred_region
          %p428 = scmp.lt.s32.totalorder %s22, 1
          %s429 = scalar_select %p428, %s22, 1
          %s430 = smul.addr %s429, 4
          %s431 = smul.addr %s430, 8
          %s432 = scalar_lea.vmem %s4, %s431
        $region36: #{gnn_forward.1} parent=31 // pred_fallthru
          _
        // Predicated region
        $region37: #{gnn_forward.1} parent=31 // pred_check
          %p433 = pneg %p152
        $region38: #{gnn_forward.1} parent=31 // pred_check_branch
          %435 = sbr.rel (%p433) target = $region40
        $region39: #{gnn_forward.1} parent=31 // pred_region
          %p436 = scmp.lt.s32.totalorder %s22, 1
          %s437 = scalar_select %p436, %s22, 1
          %s438 = scalar_lea.vmem %s5, %s437
        $region40: #{gnn_forward.1} parent=31 // pred_fallthru
          _
        // Predicated region
        $region41: #{gnn_forward.1} parent=31 // pred_check
          %p439 = pneg %p178
        $region42: #{gnn_forward.1} parent=31 // pred_check_branch
          %441 = sbr.rel (%p439) target = $region44
        $region43: #{gnn_forward.1} parent=31 // pred_region
          %p442 = scmp.lt.s32.totalorder %s22, 1
          %s443 = scalar_select %p442, %s22, 1
          %s444 = scalar_lea.vmem %s6, %s443
        $region44: #{gnn_forward.1} parent=31 // pred_fallthru
          _
        // Predicated region
        $region45: #{gnn_forward.1} parent=31 // pred_check
          %p445 = pneg %p204
        $region46: #{gnn_forward.1} parent=31 // pred_check_branch
          %447 = sbr.rel (%p445) target = $region48
        $region47: #{gnn_forward.1} parent=31 // pred_region
          %p448 = scmp.lt.s32.totalorder %s22, 1
          %s449 = scalar_select %p448, %s22, 1
          %s450 = scalar_lea.vmem %s7, %s449
        $region48: #{gnn_forward.1} parent=31 // pred_fallthru
          _
        // Predicated region
        $region49: #{gnn_forward.1} parent=31 // pred_check
          %p451 = pneg %p230
        $region50: #{gnn_forward.1} parent=31 // pred_check_branch
          %453 = sbr.rel (%p451) target = $region52
        $region51: #{gnn_forward.1} parent=31 // pred_region
          %p454 = scmp.lt.s32.totalorder %s22, 1
          %s455 = scalar_select %p454, %s22, 1
          %s456 = smul.addr %s455, 4
          %s457 = smul.addr %s456, 8
          %s458 = scalar_lea.vmem %s8, %s457
        $region52: #{gnn_forward.1} parent=31 // pred_fallthru
          _
        // Predicated region
        $region53: #{gnn_forward.1} parent=31 // pred_check
          %p459 = pneg %p256
        $region54: #{gnn_forward.1} parent=31 // pred_check_branch
          %461 = sbr.rel (%p459) target = $region56
        $region55: #{gnn_forward.1} parent=31 // pred_region
          %p462 = scmp.lt.s32.totalorder %s22, 1
          %s463 = scalar_select %p462, %s22, 1
          %s464 = scalar_lea.vmem %s9, %s463
        $region56: #{gnn_forward.1} parent=31 // pred_fallthru
          _
        // Predicated region
        $region57: #{gnn_forward.1} parent=31 // pred_check
          %p465 = pneg %p282
        $region58: #{gnn_forward.1} parent=31 // pred_check_branch
          %467 = sbr.rel (%p465) target = $region60
        $region59: #{gnn_forward.1} parent=31 // pred_region
          %p468 = scmp.lt.s32.totalorder %s22, 1
          %s469 = scalar_select %p468, %s22, 1
          %s470 = smul.addr %s469, 4
          %s471 = smul.addr %s470, 8
          %s472 = scalar_lea.vmem %s10, %s471
        $region60: #{gnn_forward.1} parent=31 // pred_fallthru
          _
        // Predicated region
        $region61: #{gnn_forward.1} parent=31 // pred_check
          %p473 = pneg %p308
        $region62: #{gnn_forward.1} parent=31 // pred_check_branch
          %475 = sbr.rel (%p473) target = $region64
        $region63: #{gnn_forward.1} parent=31 // pred_region
          %p476 = scmp.lt.s32.totalorder %s22, 1
          %s477 = scalar_select %p476, %s22, 1
          %s478 = scalar_lea.vmem %s11, %s477
        $region64: #{gnn_forward.1} parent=31 // pred_fallthru
          _
        // Predicated region
        $region65: #{gnn_forward.1} parent=31 // pred_check
          %p479 = pneg %p334
        $region66: #{gnn_forward.1} parent=31 // pred_check_branch
          %481 = sbr.rel (%p479) target = $region68
        $region67: #{gnn_forward.1} parent=31 // pred_region
          %p482 = scmp.lt.s32.totalorder %s22, 1
          %s483 = scalar_select %p482, %s22, 1
          %s484 = scalar_lea.vmem %s12, %s483
        $region68: #{gnn_forward.1} parent=31 // pred_fallthru
          _
        // Predicated region
        $region69: #{gnn_forward.1} parent=31 // pred_check
          %p485 = pneg %p360
        $region70: #{gnn_forward.1} parent=31 // pred_check_branch
          %487 = sbr.rel (%p485) target = $region72
        $region71: #{gnn_forward.1} parent=31 // pred_region
          %p488 = scmp.lt.s32.totalorder %s22, 1
          %s489 = scalar_select %p488, %s22, 1
          %s490 = scalar_lea.vmem %s13, %s489
        $region72: #{gnn_forward.1} parent=31 // pred_fallthru
          _
      $region32: #{gnn_forward.1} parent=5 // pred_fallthru
        _
      %p491 = scmp.le.s32.totalorder 1, %s22
      %p492 = scmp.lt.s32.totalorder %s22, 3
      %p493 = pnand %p491, %p492
      %p494 = pneg %p493
      // Predicated region
      $region73: #{gnn_forward.1} parent=5 // pred_check
        _
      $region74: #{gnn_forward.1} parent=5 // pred_check_branch
        %496 = sbr.rel (%p493) target = $region76
      $region75: #{gnn_forward.1} parent=5 // pred_region
        %s497 = ssub.s32 %s22, 1
        // Predicated region
        $region77: #{gnn_forward.1} parent=75 // pred_check
          %p498 = pneg %p43
        $region78: #{gnn_forward.1} parent=75 // pred_check_branch
          %500 = sbr.rel (%p498) target = $region80
        $region79: #{gnn_forward.1} parent=75 // pred_region
          %502 = dma.done [#allocation5], 16
        $region80: #{gnn_forward.1} parent=75 // pred_fallthru
          _
        %503 = sfence
        %p504 = pneg %p43
        %p505 = pneg %p40
        %p506 = pneg %p64
        %p507 = pneg %p61
        %p508 = pneg %p85
        %p509 = pneg %p82
        %p510 = pneg %p106
        %p511 = pneg %p103
        %p512 = scmp.lt.s32.totalorder %s27, 1
        %s513 = scalar_select %p512, %s27, 1
        %s514 = smul.addr %s513, 4
        %s515 = smul.addr %s514, 8
        %s516 = scalar_lea.vmem %s4, %s515
        %p517 = pneg %p132
        %p518 = pneg %p129
        %p519 = scmp.lt.s32.totalorder %s27, 1
        %s520 = scalar_select %p519, %s27, 1
        %s521 = scalar_lea.vmem %s5, %s520
        %p522 = pneg %p158
        %p523 = pneg %p155
        %p524 = scmp.lt.s32.totalorder %s27, 1
        %s525 = scalar_select %p524, %s27, 1
        %s526 = scalar_lea.vmem %s6, %s525
        %p527 = pneg %p184
        %p528 = pneg %p181
        %p529 = scmp.lt.s32.totalorder %s27, 1
        %s530 = scalar_select %p529, %s27, 1
        %s531 = scalar_lea.vmem %s7, %s530
        %p532 = pneg %p210
        %p533 = pneg %p207
        %p534 = scmp.lt.s32.totalorder %s27, 1
        %s535 = scalar_select %p534, %s27, 1
        %s536 = smul.addr %s535, 4
        %s537 = smul.addr %s536, 8
        %s538 = scalar_lea.vmem %s8, %s537
        %p539 = pneg %p236
        %p540 = pneg %p233
        %p541 = scmp.lt.s32.totalorder %s27, 1
        %s542 = scalar_select %p541, %s27, 1
        %s543 = scalar_lea.vmem %s9, %s542
        %p544 = pneg %p262
        %p545 = pneg %p259
        %p546 = scmp.lt.s32.totalorder %s27, 1
        %s547 = scalar_select %p546, %s27, 1
        %s548 = smul.addr %s547, 4
        %s549 = smul.addr %s548, 8
        %s550 = scalar_lea.vmem %s10, %s549
        %p551 = pneg %p288
        %p552 = pneg %p285
        %p553 = scmp.lt.s32.totalorder %s27, 1
        %s554 = scalar_select %p553, %s27, 1
        %s555 = scalar_lea.vmem %s11, %s554
        %p556 = pneg %p314
        %p557 = pneg %p311
        %p558 = scmp.lt.s32.totalorder %s27, 1
        %s559 = scalar_select %p558, %s27, 1
        %s560 = scalar_lea.vmem %s12, %s559
        %p561 = pneg %p340
        %p562 = pneg %p337
        %p563 = scmp.lt.s32.totalorder %s27, 1
        %s564 = scalar_select %p563, %s27, 1
        %s565 = scalar_lea.vmem %s13, %s564
        %p566 = pneg %p366
        %p567 = pneg %p363
        %p568 = pneg %p387
        %p569 = pneg %p384
        %p570 = scmp.lt.s32.totalorder %s27, 1
        %s571 = scalar_select %p570, %s27, 1
        %s572 = smul.addr %s571, 4
        %s573 = smul.addr %s572, 8
        %s574 = scalar_lea.vmem %s4, %s573
        %p575 = scmp.lt.s32.totalorder %s27, 1
        %s576 = scalar_select %p575, %s27, 1
        %s577 = scalar_lea.vmem %s5, %s576
        %p578 = scmp.lt.s32.totalorder %s27, 1
        %s579 = scalar_select %p578, %s27, 1
        %s580 = scalar_lea.vmem %s6, %s579
        %p581 = scmp.lt.s32.totalorder %s27, 1
        %s582 = scalar_select %p581, %s27, 1
        %s583 = scalar_lea.vmem %s7, %s582
        %p584 = scmp.lt.s32.totalorder %s27, 1
        %s585 = scalar_select %p584, %s27, 1
        %s586 = smul.addr %s585, 4
        %s587 = smul.addr %s586, 8
        %s588 = scalar_lea.vmem %s8, %s587
        %p589 = scmp.lt.s32.totalorder %s27, 1
        %s590 = scalar_select %p589, %s27, 1
        %s591 = scalar_lea.vmem %s9, %s590
        %p592 = scmp.lt.s32.totalorder %s27, 1
        %s593 = scalar_select %p592, %s27, 1
        %s594 = smul.addr %s593, 4
        %s595 = smul.addr %s594, 8
        %s596 = scalar_lea.vmem %s10, %s595
        %p597 = scmp.lt.s32.totalorder %s27, 1
        %s598 = scalar_select %p597, %s27, 1
        %s599 = scalar_lea.vmem %s11, %s598
        %p600 = scmp.lt.s32.totalorder %s27, 1
        %s601 = scalar_select %p600, %s27, 1
        %s602 = scalar_lea.vmem %s12, %s601
        %p603 = scmp.lt.s32.totalorder %s27, 1
        %s604 = scalar_select %p603, %s27, 1
        %s605 = scalar_lea.vmem %s13, %s604
        %p606 = scmp.eq.s32.totalorder %s27, 0
        // Predicated region
        $region81: #{gnn_forward.1} parent=75 // pred_check
          %p607 = pneg %p606
        $region82: #{gnn_forward.1} parent=75 // pred_check_branch
          %609 = sbr.rel (%p607) target = $region84
        $region83: #{gnn_forward.1} parent=75 // pred_region
          %v610 = vld [vmem:[%s1] sm:$0xff]
          %v611 = vld [vmem:[%s1 + $0x8] sm:$0xff]
          %vm612 = vcmask 261120
          %613 = vst.msk [vmem:[#allocation2] sm:$0xff] %vm612, %v610
          %614 = vst.msk [vmem:[#allocation2 + $0x8] sm:$0xff] %vm612, %v611
          %vm615 = vcmask 17408
          %616 = vst.msk [vmem:[#allocation6] sm:$0x3] %vm615, 0.0
        $region84: #{gnn_forward.1} parent=75 // pred_fallthru
          _
        %v617 = vld [vmem:[#allocation2] sm:$0xff]
        %v618 = vld [vmem:[#allocation2 + $0x8] sm:$0xff]
        %v619 = vld [vmem:[%s2] sm:$0xff]
        %v620 = vld [vmem:[%s2 + $0x8] sm:$0xff]
        %vm621 = vcmask 130048
        %v623 = vsel %vm621, %v619, 0
        %v626 = vsel %vm621, %v620, 0
        %628 = vmatpush.msra.mxu0 0.0
        %629 = vmatpush.msra.mxu0 0.0
        %630 = vmatpush.msra.mxu0 0.0
        %631 = vmatpush.msra.mxu0 0.0
        %632 = vmatpush.msra.mxu0 0.0
        %633 = vmatpush.msra.mxu0 0.0
        %634 = vmatpush.msra.mxu0 0.0
        %635 = vmatpush.msra.mxu0 0.0
        %636 = vmatpush.msra.mxu0 0.0
        %637 = vmatpush.msra.mxu0 0.0
        %638 = vmatpush.msra.mxu0 0.0
        %639 = vmatpush.msra.mxu0 0.0
        %640 = vmatpush.msra.mxu0 0.0
        %641 = vmatpush.msra.mxu0 0.0
        %642 = vmatpush.msra.mxu0 %v618
        %643 = vmatpush.msra.mxu0 %v617
        %644 = vmatmul.f32.gmra.mxu0 %v623
        %v645 = vpop.f32.mrf.mxu0
        %v646 = vadd.f32 0.0, %v645
        %647 = vmatmul.f32.gmra.mxu0 %v626
        %v648 = vpop.f32.mrf.mxu0
        %v649 = vadd.f32 0.0, %v648
        %650 = vdwg.mxu0
        %s651 = sld [smem:[#allocation3 + %s27]]
        %s652 = sadd.f32 %s651, 1.0
        %v653 = vstv %s652
        %v654 = vmul.f32 %v653, %v617
        %v655 = vmul.f32 %v653, %v618
        %v656 = vadd.f32 %v654, %v646
        %v657 = vadd.f32 %v655, %v649
        %v658 = vld [vmem:[%s574] sm:$0xff]
        %v659 = vld [vmem:[%s574 + $0x8] sm:$0xff]
        %v660 = vld [vmem:[%s574 + $0x10] sm:$0xff]
        %v661 = vld [vmem:[%s574 + $0x18] sm:$0xff]
        %v662 = vld [vmem:[%s577] sm:$0x1]
        %v664 = vperm.slane %v662, 0
        %vm666 = vcmask 261120
        %v668 = vsel %vm666, %v656, 0
        %v671 = vsel %vm666, %v657, 0
        %673 = vmatpush.msra.mxu0 0.0
        %674 = vmatpush.msra.mxu0 0.0
        %675 = vmatpush.msra.mxu0 0.0
        %676 = vmatpush.msra.mxu0 0.0
        %677 = vmatpush.msra.mxu0 0.0
        %678 = vmatpush.msra.mxu0 0.0
        %679 = vmatpush.msra.mxu0 0.0
        %680 = vmatpush.msra.mxu0 0.0
        %681 = vmatpush.msra.mxu0 0.0
        %682 = vmatpush.msra.mxu0 0.0
        %683 = vmatpush.msra.mxu0 0.0
        %684 = vmatpush.msra.mxu0 0.0
        %685 = vmatpush.msra.mxu0 %v661
        %686 = vmatpush.msra.mxu0 %v660
        %687 = vmatpush.msra.mxu0 %v659
        %688 = vmatpush.msra.mxu0 %v658
        %689 = vmatmul.f32.gmra.mxu0 %v668
        %v690 = vpop.f32.mrf.mxu0
        %v691 = vadd.f32 %v664, %v690
        %692 = vmatmul.f32.gmra.mxu0 %v671
        %v693 = vpop.f32.mrf.mxu0
        %v694 = vadd.f32 %v664, %v693
        %695 = vdwg.mxu0
        %v696 = vsel %vm666, %v691, 0.0
        %v697 = vsel %vm666, %v694, 0.0
        %v698 = vadd.f32 %v696, %v697
        %v699 = vrot.slane %v698, 4
        %v700 = vadd.f32 %v698, %v699
        %v701 = vrot.slane %v700, 2
        %v702 = vadd.f32 %v700, %v701
        %v703 = vrot.slane %v702, 1
        %v704 = vadd.f32 %v702, %v703
        %v705 = vrcp.pop 16.0
        %v706 = vmul.f32 16.0, %v705
        %v707 = vsub.f32 1.0, %v706
        %v708 = vmul.f32 %v705, %v707
        %v709 = vadd.f32 %v705, %v708
        %vm710 = vweird.f32 %v705
        %v711 = vsel %vm710, %v705, %v709
        %v712 = vmul.f32 %v704, %v711
        %v713 = vsub.f32 %v691, %v712
        %v714 = vsub.f32 %v694, %v712
        %v715 = vmul.f32 %v713, %v713
        %v716 = vmul.f32 %v714, %v714
        %v717 = vsel %vm666, %v715, 0.0
        %v718 = vsel %vm666, %v716, 0.0
        %v719 = vadd.f32 %v717, %v718
        %v720 = vrot.slane %v719, 4
        %v721 = vadd.f32 %v719, %v720
        %v722 = vrot.slane %v721, 2
        %v723 = vadd.f32 %v721, %v722
        %v724 = vrot.slane %v723, 1
        %v725 = vadd.f32 %v723, %v724
        %v726 = vmul.f32 %v725, %v711
        %v727 = vadd.f32 %v726, 1e-05
        %v728 = vrsqrt.pop %v727
        %v729 = vmul.f32 %v728, %v727
        %v730 = vmul.f32 %v729, %v728
        %v731 = vmul.f32 0.5, %v730
        %v732 = vsub.f32 1.5, %v731
        %v733 = vmul.f32 %v728, %v732
        %vm734 = vweird.f32 %v727
        %vm735 = vweird.f32 %v728
        %vm736 = vmor %vm734, %vm735
        %v737 = vsel %vm736, %v728, %v733
        %v738 = vmul.f32 %v713, %v737
        %v739 = vmul.f32 %v714, %v737
        %v740 = vld [vmem:[%s580] sm:$0x1]
        %v742 = vperm.slane %v740, 0
        %v744 = vmul.f32 %v738, %v742
        %v745 = vmul.f32 %v739, %v742
        %v746 = vld [vmem:[%s583] sm:$0x1]
        %v748 = vperm.slane %v746, 0
        %v750 = vadd.f32 %v744, %v748
        %v751 = vadd.f32 %v745, %v748
        %v752 = vmax.f32 %v750, 0.0
        %v753 = vmax.f32 %v751, 0.0
        %v754 = vld [vmem:[%s588] sm:$0xff]
        %v755 = vld [vmem:[%s588 + $0x8] sm:$0xff]
        %v756 = vld [vmem:[%s588 + $0x10] sm:$0xff]
        %v757 = vld [vmem:[%s588 + $0x18] sm:$0xff]
        %v758 = vld [vmem:[%s591] sm:$0x1]
        %v760 = vperm.slane %v758, 0
        %v763 = vsel %vm666, %v752, 0
        %v766 = vsel %vm666, %v753, 0
        %768 = vmatpush.msra.mxu0 0.0
        %769 = vmatpush.msra.mxu0 0.0
        %770 = vmatpush.msra.mxu0 0.0
        %771 = vmatpush.msra.mxu0 0.0
        %772 = vmatpush.msra.mxu0 0.0
        %773 = vmatpush.msra.mxu0 0.0
        %774 = vmatpush.msra.mxu0 0.0
        %775 = vmatpush.msra.mxu0 0.0
        %776 = vmatpush.msra.mxu0 0.0
        %777 = vmatpush.msra.mxu0 0.0
        %778 = vmatpush.msra.mxu0 0.0
        %779 = vmatpush.msra.mxu0 0.0
        %780 = vmatpush.msra.mxu0 %v757
        %781 = vmatpush.msra.mxu0 %v756
        %782 = vmatpush.msra.mxu0 %v755
        %783 = vmatpush.msra.mxu0 %v754
        %784 = vmatmul.f32.gmra.mxu0 %v763
        %v785 = vpop.f32.mrf.mxu0
        %v786 = vadd.f32 %v760, %v785
        %787 = vmatmul.f32.gmra.mxu0 %v766
        %v788 = vpop.f32.mrf.mxu0
        %v789 = vadd.f32 %v760, %v788
        %790 = vdwg.mxu0
        %791 = vst.msk [vmem:[#allocation2] sm:$0xff] %vm666, %v786
        %792 = vst.msk [vmem:[#allocation2 + $0x8] sm:$0xff] %vm666, %v789
        %v793 = vld [vmem:[%s3] sm:$0x3]
        %v795 = vsel %vm621, %v793, 0
        %797 = vmatpush.msra.mxu0 0.0
        %798 = vmatpush.msra.mxu0 0.0
        %799 = vmatpush.msra.mxu0 0.0
        %800 = vmatpush.msra.mxu0 0.0
        %801 = vmatpush.msra.mxu0 0.0
        %802 = vmatpush.msra.mxu0 0.0
        %803 = vmatpush.msra.mxu0 0.0
        %804 = vmatpush.msra.mxu0 0.0
        %805 = vmatpush.msra.mxu0 0.0
        %806 = vmatpush.msra.mxu0 0.0
        %807 = vmatpush.msra.mxu0 0.0
        %808 = vmatpush.msra.mxu0 0.0
        %809 = vmatpush.msra.mxu0 0.0
        %810 = vmatpush.msra.mxu0 0.0
        %811 = vmatpush.msra.mxu0 %v789
        %812 = vmatpush.msra.mxu0 %v786
        %813 = vmatmul.f32.gmra.mxu0 %v795
        %v814 = vpop.f32.mrf.mxu0
        %v815 = vadd.f32 0.0, %v814
        %816 = vdwg.mxu0
        %v817 = vld [vmem:[%s596] sm:$0xff]
        %v818 = vld [vmem:[%s596 + $0x8] sm:$0xff]
        %v819 = vld [vmem:[%s596 + $0x10] sm:$0xff]
        %v820 = vld [vmem:[%s596 + $0x18] sm:$0xff]
        %v821 = vld [vmem:[%s599] sm:$0x1]
        %v823 = vperm.slane %v821, 0
        %v826 = vsel %vm666, %v815, 0
        %828 = vmatpush.msra.mxu0 0.0
        %829 = vmatpush.msra.mxu0 0.0
        %830 = vmatpush.msra.mxu0 0.0
        %831 = vmatpush.msra.mxu0 0.0
        %832 = vmatpush.msra.mxu0 0.0
        %833 = vmatpush.msra.mxu0 0.0
        %834 = vmatpush.msra.mxu0 0.0
        %835 = vmatpush.msra.mxu0 0.0
        %836 = vmatpush.msra.mxu0 0.0
        %837 = vmatpush.msra.mxu0 0.0
        %838 = vmatpush.msra.mxu0 0.0
        %839 = vmatpush.msra.mxu0 0.0
        %840 = vmatpush.msra.mxu0 %v820
        %841 = vmatpush.msra.mxu0 %v819
        %842 = vmatpush.msra.mxu0 %v818
        %843 = vmatpush.msra.mxu0 %v817
        %844 = vmatmul.f32.gmra.mxu0 %v826
        %v845 = vpop.f32.mrf.mxu0
        %v846 = vadd.f32 %v823, %v845
        %847 = vdwg.mxu0
        %vm848 = vcmask 17408
        %v849 = vsel %vm848, %v846, 0.0
        %v850 = vrot.slane %v849, 4
        %v851 = vadd.f32 %v849, %v850
        %v852 = vrot.slane %v851, 2
        %v853 = vadd.f32 %v851, %v852
        %v854 = vrot.slane %v853, 1
        %v855 = vadd.f32 %v853, %v854
        %v856 = vrcp.pop 2.0
        %v857 = vmul.f32 2.0, %v856
        %v858 = vsub.f32 1.0, %v857
        %v859 = vmul.f32 %v856, %v858
        %v860 = vadd.f32 %v856, %v859
        %vm861 = vweird.f32 %v856
        %v862 = vsel %vm861, %v856, %v860
        %v863 = vmul.f32 %v855, %v862
        %v864 = vsub.f32 %v846, %v863
        %v865 = vmul.f32 %v864, %v864
        %v866 = vsel %vm848, %v865, 0.0
        %v867 = vrot.slane %v866, 4
        %v868 = vadd.f32 %v866, %v867
        %v869 = vrot.slane %v868, 2
        %v870 = vadd.f32 %v868, %v869
        %v871 = vrot.slane %v870, 1
        %v872 = vadd.f32 %v870, %v871
        %v873 = vmul.f32 %v872, %v862
        %v874 = vadd.f32 %v873, 1e-05
        %v875 = vrsqrt.pop %v874
        %v876 = vmul.f32 %v875, %v874
        %v877 = vmul.f32 %v876, %v875
        %v878 = vmul.f32 0.5, %v877
        %v879 = vsub.f32 1.5, %v878
        %v880 = vmul.f32 %v875, %v879
        %vm881 = vweird.f32 %v874
        %vm882 = vweird.f32 %v875
        %vm883 = vmor %vm881, %vm882
        %v884 = vsel %vm883, %v875, %v880
        %v885 = vmul.f32 %v864, %v884
        %v886 = vld [vmem:[%s602] sm:$0x1]
        %v888 = vperm.slane %v886, 0
        %v890 = vmul.f32 %v885, %v888
        %v891 = vld [vmem:[%s605] sm:$0x1]
        %v893 = vperm.slane %v891, 0
        %v895 = vadd.f32 %v890, %v893
        %v896 = vld [vmem:[#allocation6] sm:$0x3]
        %v897 = vadd.f32 %v896, %v895
        %898 = vst.msk [vmem:[#allocation6] sm:$0x3] %vm848, %v897
        // Predicated region
        $region85: #{gnn_forward.1} parent=75 // pred_check
          %p899 = pneg %p384
        $region86: #{gnn_forward.1} parent=75 // pred_check_branch
          %901 = sbr.rel (%p899) target = $region88
        $region87: #{gnn_forward.1} parent=75 // pred_region
          %903 = vsyncadd [#allocation4], 0
          %s905 = sshll.u32 [#allocation6], 4
          %s906 = int_to_ptr.vmem [resolvable:$true] %s905
          %s907 = sshll.u32 %s14, 4
          %s908 = int_to_ptr.hbm [resolvable:$true] %s907
          %910 = dma.vmem_to_hbm [thread:$0]  %s906, 32, %s908, [#allocation4]
        $region88: #{gnn_forward.1} parent=75 // pred_fallthru
          _
        // Predicated region
        $region89: #{gnn_forward.1} parent=75 // pred_check
          %p911 = pneg %p384
        $region90: #{gnn_forward.1} parent=75 // pred_check_branch
          %913 = sbr.rel (%p911) target = $region92
        $region91: #{gnn_forward.1} parent=75 // pred_region
          %915 = dma.done [#allocation4], 32
        $region92: #{gnn_forward.1} parent=75 // pred_fallthru
          _
      $region76: #{gnn_forward.1} parent=5 // pred_fallthru
        _
      %p916 = scmp.le.s32.totalorder 2, %s22
      // Predicated region
      $region93: #{gnn_forward.1} parent=5 // pred_check
        %p917 = pneg %p916
      $region94: #{gnn_forward.1} parent=5 // pred_check_branch
        %919 = sbr.rel (%p917) target = $region96
      $region95: #{gnn_forward.1} parent=5 // pred_region
        %s920 = ssub.s32 %s22, 2
      $region96: #{gnn_forward.1} parent=5 // pred_fallthru
        _
    $region6: #{gnn_forward.1} parent=1 // loop_footer
      %s26 = sadd.s32 1, %s22
    $region7: #{gnn_forward.1} parent=1 // loop_footer_branch
      %21 = sbr.rel target = $region3
    $region8: #{gnn_forward.1} parent=1 // loop_exit
      _
    %921 = vsyncpa [#allocation4], 1
    %s922 = scalar_lea.sflag [#allocation4], 1
    %923 = vsyncpa %s922, 1
    %924 = vsyncpa [#allocation5], 1
    %s925 = scalar_lea.sflag [#allocation5], 1
    %926 = vsyncpa %s925, 1

</llo_original>
